<compile_context>
chip_gen: v6e
topology: v6e:2x2x1
jax: 0.10.0
libtpu: 0.0.40
codegen_flags: <defaults>
</compile_context>

<pallas_src>
import jax
import jax.numpy as jnp
from jax.experimental import pallas as pl
from jax.experimental.pallas import tpu as pltpu

_SUBLANE = 8
_LANE = 128
_DEFAULT_VMEM_CAP = 64 * 1024 * 1024     # v7x per-TC VMEM (most conservative fallback)
_VMEM_LIMIT_CAP = 100 * 1024 * 1024      # never request more than this
_VMEM_HEADROOM = 2 * 1024 * 1024         # Mosaic internal scratch / semaphores / metadata


def _round_up(v, m):
    return ((v + m - 1) // m) * m


def _vmem_limit_bytes():
    """Generation-aware VMEM budget: ~3/4 of physical, capped, with a safe fallback."""
    try:
        cap = int(pltpu.get_tpu_info().vmem_capacity_bytes)
    except Exception:
        cap = _DEFAULT_VMEM_CAP
    return max(32 * 1024 * 1024, min(cap * 3 // 4, _VMEM_LIMIT_CAP))


def _resident_spec(block_shape, index_map):
    """BlockSpec for a grid-invariant operand; single-buffered when supported."""
    try:
        return pl.BlockSpec(block_shape, index_map, pipeline_mode=pl.Buffered(1)), 1
    except Exception:  # older JAX without pipeline_mode / Buffered(1)
        return pl.BlockSpec(block_shape, index_map), 2


def _residual_linear_kernel(x_ref, w_ref, b_ref, o_ref):
    # x_ref: (TR, Dp) f32 | w_ref: (Dp, Dp) bf16 | b_ref: (1, Dp) f32 | o_ref: (TR, Dp)
    x = x_ref[...]                                        # f32, reused for the residual
    y = jnp.dot(x.astype(w_ref.dtype), w_ref[...],        # bf16 MXU inputs
                preferred_element_type=jnp.float32)       # f32 accumulation
    # f32 epilogue: bias + residual against the ORIGINAL f32 x.
    # TODO(synk): the adjacent ViT elementwise work (preceding LayerNorm / following
    # GELU) could be fused into this epilogue for free (HBM-bound, VPU has slack).
    o_ref[...] = (y + b_ref[...] + x).astype(o_ref.dtype)


def prepare_linear_params(w, b, compute_dtype=jnp.bfloat16):
    """One-time weight prep (lane-pad + bf16 cast), hoisted out of the per-call path."""
    D = w.shape[0]
    Dp = _round_up(D, _LANE)
    w_p = jnp.pad(w, ((0, Dp - D), (0, Dp - D))).astype(compute_dtype)
    b_p = jnp.pad(b, (0, Dp - D)).reshape(1, Dp).astype(jnp.float32)
    return w_p, b_p


def residual_adding(x, w_p, b_p, *, max_tile_rows=2048, min_grid_steps=8,
                    out_dtype=None):
    """out = (x @ W + b) + x  for x: (B, N, D); w_p/b_p from prepare_linear_params."""
    B, N, D = x.shape
    Dp = w_p.shape[0]
    assert w_p.shape == (Dp, Dp) and b_p.shape == (1, Dp)
    assert Dp % _LANE == 0 and Dp >= D
    out_dtype = x.dtype if out_dtype is None else out_dtype
    out_itemsize = jnp.dtype(out_dtype).itemsize

    rows = B * N
    x2 = x.reshape(rows, D)

    # Lane-dense last dim: only pad the activations when D is not already 128-aligned
    # (real ViT widths 384/768/1024 need no pad -> no extra HBM round trip).
    need_col_pad = Dp != D
    if need_col_pad:
        x2 = jnp.pad(x2, ((0, 0), (0, Dp - D)))

    # Grid-invariant operands: single-buffered when supported.
    w_spec, w_bufs = _resident_spec((Dp, Dp), lambda i: (0, 0))
    b_spec, b_bufs = _resident_spec((1, Dp), lambda i: (0, 0))

    # Row-tile sizing: enough grid steps for pipelining / 2-TC sharding, tiles as
    # large as the generation-aware VMEM budget allows.
    vmem_limit = _vmem_limit_bytes()
    fixed_bytes = (w_bufs * Dp * Dp * w_p.dtype.itemsize
                   + b_bufs * Dp * jnp.dtype(jnp.float32).itemsize)
    tile_budget = max(4 * 1024 * 1024, vmem_limit - fixed_bytes - _VMEM_HEADROOM)

    def tiles_bytes(tr):  # double-buffered x (f32) + double-buffered out
        return 2 * tr * Dp * 4 + 2 * tr * Dp * out_itemsize

    target = _round_up(max(pl.cdiv(rows, min_grid_steps), _SUBLANE), _SUBLANE)
    tile_rows = min(target, _round_up(max_tile_rows, _SUBLANE))
    while tile_rows > _SUBLANE and tiles_bytes(tile_rows) > tile_budget:
        tile_rows = max(_SUBLANE, _round_up(tile_rows // 2, _SUBLANE))

    grid = (pl.cdiv(rows, tile_rows),)  # no row padding: Pallas masks the last block

    cost = pl.CostEstimate(
        flops=2 * rows * Dp * Dp,
        bytes_accessed=(rows * Dp * 4 + rows * Dp * out_itemsize
                        + Dp * Dp * w_p.dtype.itemsize + Dp * 4),
        transcendentals=0,
    )

    # Alias x's HBM buffer with the output only when x2 is a fresh padded temporary
    # (same shape/dtype; each tile reads its input block before writing it back).
    io_aliases = {0: 0} if (need_col_pad and out_dtype == x.dtype) else {}

    out = pl.pallas_call(
        _residual_linear_kernel,
        out_shape=jax.ShapeDtypeStruct((rows, Dp), out_dtype),
        grid_spec=pltpu.PrefetchScalarGridSpec(
            num_scalar_prefetch=0,
            grid=grid,
            in_specs=[
                pl.BlockSpec((tile_rows, Dp), lambda i: (i, 0)),  # x row tile
                w_spec,                                           # W, VMEM-resident
                b_spec,                                           # bias, VMEM-resident
            ],
            out_specs=pl.BlockSpec((tile_rows, Dp), lambda i: (i, 0)),
        ),
        compiler_params=pltpu.CompilerParams(
            # Independent row tiles: megacore / 2-TC sharding where supported.
            dimension_semantics=("parallel",),
            vmem_limit_bytes=vmem_limit,
        ),
        cost_estimate=cost,
        input_output_aliases=io_aliases,
    )(x2, w_p, b_p)

    if need_col_pad:
        out = out[:, :D]
    return out.reshape(B, N, D)


if __name__ == "__main__":
    key = jax.random.PRNGKey(0)
    kx, kw, kb = jax.random.split(key, 3)

    B, N, D = 2, 8, 32  # small ViT-like token shapes
    x = jax.random.normal(kx, (B, N, D), dtype=jnp.float32)

    # Deterministic "func" parameters: Linear(D, D)
    w = jax.random.normal(kw, (D, D), dtype=jnp.float32) * 0.02
    b = jax.random.normal(kb, (D,), dtype=jnp.float32) * 0.02

    # One-time weight prep, hoisted out of the per-call path.
    w_p, b_p = prepare_linear_params(w, b)

    fn = jax.jit(residual_adding)
    out = jax.block_until_ready(fn(x, w_p, b_p))

    # Reference with the same math as the kernel (bf16 MXU inputs, f32 accumulation,
    # f32 bias + residual epilogue).
    y_bf16 = jnp.einsum(
        "bnd,de->bne",
        x.astype(jnp.bfloat16), w.astype(jnp.bfloat16),
        preferred_element_type=jnp.float32,
    )
    ref_bf16 = y_bf16 + b + x
    # Exact-f32 reference (loose tolerance covers the bf16 matmul inputs).
    ref_f32 = jnp.einsum("bnd,de->bne", x, w) + b + x

    assert out.shape == x.shape and out.dtype == x.dtype
    assert jnp.allclose(out, ref_bf16, atol=1e-4, rtol=1e-4), \
        "mismatch vs bf16-matmul reference"
    assert jnp.allclose(out, ref_f32, atol=5e-2, rtol=5e-2), \
        "mismatch vs exact f32 reference"

    print("KERNEL_OK")
</pallas_src>

<mosaic_0001>
module attributes {stable_mosaic.version = 11 : i64} {
  func.func @_residual_linear_kernel(%arg0: i32, %arg1: memref<8x128xf32, #tpu.memory_space<vmem>>, %arg2: memref<128x128xbf16, #tpu.memory_space<vmem>>, %arg3: memref<1x128xf32, #tpu.memory_space<vmem>>, %arg4: memref<8x128xf32, #tpu.memory_space<vmem>>) attributes {dimension_semantics = [#tpu.dimension_semantics<parallel>], iteration_bounds = array<i64: 2>, scalar_prefetch = 0 : i64, scratch_operands = 0 : i64, tpu.core_type = #tpu.core_type<tc>, window_params = [{transform_indices = @transform_0, window_bounds = array<i64: 8, 128>}, {pipeline_mode = #tpu.pipeline_mode<synchronous>, transform_indices = @transform_1, window_bounds = array<i64: 128, 128>}, {pipeline_mode = #tpu.pipeline_mode<synchronous>, transform_indices = @transform_2, window_bounds = array<i64: 1, 128>}, {transform_indices = @transform_3, window_bounds = array<i64: 8, 128>}]} {
    %c0 = arith.constant 0 : index
    %c0_0 = arith.constant 0 : index
    %0 = vector.load %arg1[%c0, %c0_0] : memref<8x128xf32, #tpu.memory_space<vmem>>, vector<8x128xf32>
    %1 = arith.truncf %0 : vector<8x128xf32> to vector<8x128xbf16>
    %c0_1 = arith.constant 0 : index
    %c0_2 = arith.constant 0 : index
    %2 = vector.load %arg2[%c0_1, %c0_2] : memref<128x128xbf16, #tpu.memory_space<vmem>>, vector<128x128xbf16>
    %cst = arith.constant dense<0.000000e+00> : vector<8x128xf32>
    %3 = tpu.matmul %1, %2, %cst {dimension_numbers = #tpu.dot_dimension_numbers<[1], [0], [0], [1], [0, 0, 1, 1], [], []>} : vector<8x128xbf16>, vector<128x128xbf16>, vector<8x128xf32> -> vector<8x128xf32>
    %c0_3 = arith.constant 0 : index
    %c0_4 = arith.constant 0 : index
    %4 = vector.load %arg3[%c0_3, %c0_4] : memref<1x128xf32, #tpu.memory_space<vmem>>, vector<1x128xf32>
    %5 = vector.broadcast %4 : vector<1x128xf32> to vector<8x128xf32>
    %6 = arith.addf %3, %5 : vector<8x128xf32>
    %7 = arith.addf %6, %0 : vector<8x128xf32>
    %c0_5 = arith.constant 0 : index
    %c0_6 = arith.constant 0 : index
    %8 = vector.load %arg4[%c0_5, %c0_6] : memref<8x128xf32, #tpu.memory_space<vmem>>, vector<8x128xf32>
    tpu.vector_store %arg4[%c0_5, %c0_6], %7 {strides = array<i32>} : memref<8x128xf32, #tpu.memory_space<vmem>>, vector<8x128xf32>,
    return
  }
  func.func @transform_0(%arg0: i32) -> (i32, i32) {
    %c0_i32 = arith.constant 0 : i32
    %c0_i32_0 = arith.constant 0 : i32
    return %arg0, %c0_i32 : i32, i32
  }
  func.func @transform_1(%arg0: i32) -> (i32, i32) {
    %c0_i32 = arith.constant 0 : i32
    %c0_i32_0 = arith.constant 0 : i32
    %c0_i32_1 = arith.constant 0 : i32
    return %c0_i32, %c0_i32_0 : i32, i32
  }
  func.func @transform_2(%arg0: i32) -> (i32, i32) {
    %c0_i32 = arith.constant 0 : i32
    %c0_i32_0 = arith.constant 0 : i32
    %c0_i32_1 = arith.constant 0 : i32
    return %c0_i32, %c0_i32_0 : i32, i32
  }
  func.func @transform_3(%arg0: i32) -> (i32, i32) {
    %c0_i32 = arith.constant 0 : i32
    %c0_i32_0 = arith.constant 0 : i32
    return %arg0, %c0_i32 : i32, i32
  }
}

</mosaic_0001>

<llo_original>
// kernel: residual_adding.1
$region0: #{residual_adding.1}
  #allocation0 [shape = 'u32[]', space=smem, size = 0x4, offset = 0x4, fixed_abs, tag = 'smem constant byte address 0x4 - core index']
  #allocation1 [shape = 'u32[144,128]{1,0:T(1,128)}', space=vmem, size = 0x12000, scoped, tag = 'internal scratch']
  %s0 = inlined_call_operand.vmem [shape: f32[16,128], index: 0, kind: input, shape index: {}, may-alias: {0,3}]
  %s1 = inlined_call_operand.hbm [shape: bf16[128,128], index: 1, kind: input, shape index: {}]
  %s2 = inlined_call_operand.vmem [shape: f32[1,128], index: 2, kind: input, shape index: {}]
  %s3 = inlined_call_operand.vmem [shape: f32[16,128], index: 3, kind: output, shape index: {}, may-alias: {0,3}]
  %s4 = sld [smem:[#allocation0]]
  $region49: #{residual_adding.1} parent=0
    _
  %s6 = ssub.s32 1, %s4
  %s7 = scalar_select 0, %s6, %s4
  $region1: #{residual_adding.1} parent=0
    #allocation2 [shape = 'u8[32768]{0}', space=vmem, size = 0x8000, scoped, tag = 'input window, operand 1, single buffered']
    #allocation3 [shape = 's32[2]{0}', space=sflag, size = 0x8, scoped, tag = 'scoped memory for residual_adding.1']
    %8 = vsyncpa [#allocation3], 0
    loop: start=0, step=1, limit=4
    $region2: #{residual_adding.1} parent=1 // loop_pre_header
      _
    $region3: #{residual_adding.1} parent=1 // loop_header
      %s10 = sphi 0, %s14
      %p11 = scmp.ge.s32.totalorder %s10, 4
      %s20 = sphi 0, %s22
      %s23 = sphi 0, %s20
      %s24 = sphi 0, %s23
      %s40 = sphi 0, %s24
      %s44 = sphi 0, %s44
      %s46 = sphi 0, %s44
      %s47 = sphi 0, %s46
      %s61 = sphi 0, %s47
      %s65 = sphi 0, %s65
      %s67 = sphi 0, %s65
      %s68 = sphi 0, %s67
      %s82 = sphi 0, %s68
      %s88 = sphi 0, %s90
      %s91 = sphi 0, %s88
      %s92 = sphi 0, %s91
      %s108 = sphi 0, %s92
    $region4: #{residual_adding.1} parent=1 // loop_header_branch
      %13 = sbr.rel (%p11) target = $region8
    $region5: #{residual_adding.1} parent=1 // loop_body
      %s15 = ssub.s32 %s10, 1
      %s16 = ssub.s32 %s10, 2
      %s17 = sadd.s32 %s10, 1
      %s18 = ssub.s32 %s10, %s17
      %p19 = scmp.eq.s32.totalorder %s18, 0
      %s21 = sadd.s32 %s20, 1
      %s22 = scalar_select %p19, %s20, %s21
      %p25 = pneg %p19
      %p26 = scmp.eq.s32.totalorder %s10, 1
      %p27 = por %p25, %p26
      %p28 = scmp.ne.s32.totalorder %s20, %s23
      %p29 = scmp.eq.s32.totalorder %s10, 0
      %p30 = por %p28, %p29
      %p31 = scmp.ne.s32.totalorder %s20, %s23
      %p32 = scmp.eq.s32.totalorder %s15, 1
      %p33 = por %p31, %p32
      %p34 = scmp.ne.s32.totalorder %s23, %s24
      %p35 = scmp.eq.s32.totalorder %s15, 0
      %p36 = por %p34, %p35
      %p37 = scmp.ne.s32.totalorder %s23, %s24
      %p38 = scmp.eq.s32.totalorder %s16, 1
      %p39 = por %p37, %p38
      %p41 = scmp.ne.s32.totalorder %s24, %s40
      %p42 = scmp.eq.s32.totalorder %s16, 0
      %p43 = por %p41, %p42
      %s45 = sadd.s32 %s44, 1
      %p48 = scmp.eq.s32.totalorder %s10, 1
      %p49 = scmp.ne.s32.totalorder %s44, %s46
      %p50 = scmp.eq.s32.totalorder %s10, 0
      %p51 = por %p49, %p50
      %p52 = scmp.ne.s32.totalorder %s44, %s46
      %p53 = scmp.eq.s32.totalorder %s15, 1
      %p54 = por %p52, %p53
      %p55 = scmp.ne.s32.totalorder %s46, %s47
      %p56 = scmp.eq.s32.totalorder %s15, 0
      %p57 = por %p55, %p56
      %p58 = scmp.ne.s32.totalorder %s46, %s47
      %p59 = scmp.eq.s32.totalorder %s16, 1
      %p60 = por %p58, %p59
      %p62 = scmp.ne.s32.totalorder %s47, %s61
      %p63 = scmp.eq.s32.totalorder %s16, 0
      %p64 = por %p62, %p63
      %s66 = sadd.s32 %s65, 1
      %p69 = scmp.eq.s32.totalorder %s10, 1
      %p70 = scmp.ne.s32.totalorder %s65, %s67
      %p71 = scmp.eq.s32.totalorder %s10, 0
      %p72 = por %p70, %p71
      %p73 = scmp.ne.s32.totalorder %s65, %s67
      %p74 = scmp.eq.s32.totalorder %s15, 1
      %p75 = por %p73, %p74
      %p76 = scmp.ne.s32.totalorder %s67, %s68
      %p77 = scmp.eq.s32.totalorder %s15, 0
      %p78 = por %p76, %p77
      %p79 = scmp.ne.s32.totalorder %s67, %s68
      %p80 = scmp.eq.s32.totalorder %s16, 1
      %p81 = por %p79, %p80
      %p83 = scmp.ne.s32.totalorder %s68, %s82
      %p84 = scmp.eq.s32.totalorder %s16, 0
      %p85 = por %p83, %p84
      %s86 = ssub.s32 %s10, %s17
      %p87 = scmp.eq.s32.totalorder %s86, 0
      %s89 = sadd.s32 %s88, 1
      %s90 = scalar_select %p87, %s88, %s89
      %p93 = pneg %p87
      %p94 = scmp.eq.s32.totalorder %s10, 1
      %p95 = por %p93, %p94
      %p96 = scmp.ne.s32.totalorder %s88, %s91
      %p97 = scmp.eq.s32.totalorder %s10, 0
      %p98 = por %p96, %p97
      %p99 = scmp.ne.s32.totalorder %s88, %s91
      %p100 = scmp.eq.s32.totalorder %s15, 1
      %p101 = por %p99, %p100
      %p102 = scmp.ne.s32.totalorder %s91, %s92
      %p103 = scmp.eq.s32.totalorder %s15, 0
      %p104 = por %p102, %p103
      %p105 = scmp.ne.s32.totalorder %s91, %s92
      %p106 = scmp.eq.s32.totalorder %s16, 1
      %p107 = por %p105, %p106
      %p109 = scmp.ne.s32.totalorder %s92, %s108
      %p110 = scmp.eq.s32.totalorder %s16, 0
      %p111 = por %p109, %p110
      %p112 = scmp.le.s32.totalorder 1, %s10
      %p113 = scmp.lt.s32.totalorder %s10, 3
      %p114 = pnand %p112, %p113
      %p115 = pneg %p114
      // Predicated region
      $region9: #{residual_adding.1} parent=5 // pred_check
        _
      $region10: #{residual_adding.1} parent=5 // pred_check_branch
        %117 = sbr.rel (%p114) target = $region12
      $region11: #{residual_adding.1} parent=5 // pred_region
        %s118 = ssub.s32 %s10, 1
        // Predicated region
        $region13: #{residual_adding.1} parent=11 // pred_check
          %p119 = pneg %p57
        $region14: #{residual_adding.1} parent=11 // pred_check_branch
          %121 = sbr.rel (%p119) target = $region16
        $region15: #{residual_adding.1} parent=11 // pred_region
          %s123 = ssub.s32 1024, 1024
          %124 = vsyncadd [#allocation3], %s123
          %s125 = sshll.u32 [#allocation2], 4
          %s126 = int_to_ptr.vmem [resolvable:$true] %s125
          %131 = dma.hbm_to_vmem [thread:$0]  %s1, 1024, %s126, [#allocation3], 64, 64, 4
        $region16: #{residual_adding.1} parent=11 // pred_fallthru
          _
        // Predicated region
        $region17: #{residual_adding.1} parent=11 // pred_check
          %p132 = pneg %p78
        $region18: #{residual_adding.1} parent=11 // pred_check_branch
          %134 = sbr.rel (%p132) target = $region20
        $region19: #{residual_adding.1} parent=11 // pred_region
          _
        $region20: #{residual_adding.1} parent=11 // pred_fallthru
          _
      $region12: #{residual_adding.1} parent=5 // pred_fallthru
        _
      %p135 = scmp.lt.s32.totalorder %s10, 2
      // Predicated region
      $region21: #{residual_adding.1} parent=5 // pred_check
        %p136 = pneg %p135
      $region22: #{residual_adding.1} parent=5 // pred_check_branch
        %138 = sbr.rel (%p136) target = $region24
      $region23: #{residual_adding.1} parent=5 // pred_region
        // Predicated region
        $region25: #{residual_adding.1} parent=23 // pred_check
          %p139 = pneg %p30
        $region26: #{residual_adding.1} parent=23 // pred_check_branch
          %141 = sbr.rel (%p139) target = $region28
        $region27: #{residual_adding.1} parent=23 // pred_region
          %p142 = scmp.lt.s32.totalorder %s10, 1
          %s143 = scalar_select %p142, %s10, 1
          %s144 = smul.addr %s143, 8
          %s145 = scalar_lea.vmem %s0, %s144
        $region28: #{residual_adding.1} parent=23 // pred_fallthru
          _
      $region24: #{residual_adding.1} parent=5 // pred_fallthru
        _
      %p146 = scmp.le.s32.totalorder 1, %s10
      %p147 = scmp.lt.s32.totalorder %s10, 3
      %p148 = pnand %p146, %p147
      %p149 = pneg %p148
      // Predicated region
      $region29: #{residual_adding.1} parent=5 // pred_check
        _
      $region30: #{residual_adding.1} parent=5 // pred_check_branch
        %151 = sbr.rel (%p148) target = $region32
      $region31: #{residual_adding.1} parent=5 // pred_region
        %s152 = ssub.s32 %s10, 1
        // Predicated region
        $region33: #{residual_adding.1} parent=31 // pred_check
          %p153 = pneg %p57
        $region34: #{residual_adding.1} parent=31 // pred_check_branch
          %155 = sbr.rel (%p153) target = $region36
        $region35: #{residual_adding.1} parent=31 // pred_region
          %156 = dma.done [#allocation3], 1024
        $region36: #{residual_adding.1} parent=31 // pred_fallthru
          _
        %p157 = scmp.lt.s32.totalorder %s15, 1
        %s158 = scalar_select %p157, %s15, 1
        %s159 = smul.addr %s158, 8
        %s160 = scalar_lea.vmem %s0, %s159
        %p161 = pneg %p36
        %p162 = pneg %p33
        %p163 = pneg %p57
        %p164 = pneg %p54
        %p165 = pneg %p78
        %p166 = pneg %p75
        %p167 = pneg %p104
        %p168 = pneg %p101
        %p169 = scmp.lt.s32.totalorder %s15, 1
        %s170 = scalar_select %p169, %s15, 1
        %s171 = smul.addr %s170, 8
        %s172 = scalar_lea.vmem %s3, %s171
        %p173 = scmp.lt.s32.totalorder %s15, 1
        %s174 = scalar_select %p173, %s15, 1
        %s175 = smul.addr %s174, 8
        %s176 = scalar_lea.vmem %s0, %s175
        %p177 = scmp.lt.s32.totalorder %s15, 1
        %s178 = scalar_select %p177, %s15, 1
        %s179 = smul.addr %s178, 8
        %s180 = scalar_lea.vmem %s3, %s179
        %v182 = vld [vmem:[%s176] sm:$0xff]
        %v183 = vpack.c.bf16 %v182, %v182
        %v184 = vld [vmem:[#allocation2] sm:$0xf]
        %v185 = vld [vmem:[#allocation2 + $0x4] sm:$0xf]
        %v186 = vld [vmem:[#allocation2 + $0x8] sm:$0xf]
        %v187 = vld [vmem:[#allocation2 + $0xc] sm:$0xf]
        %v188 = vld [vmem:[#allocation2 + $0x10] sm:$0xf]
        %v189 = vld [vmem:[#allocation2 + $0x14] sm:$0xf]
        %v190 = vld [vmem:[#allocation2 + $0x18] sm:$0xf]
        %v191 = vld [vmem:[#allocation2 + $0x1c] sm:$0xf]
        %v192 = vld [vmem:[#allocation2 + $0x20] sm:$0xf]
        %v193 = vld [vmem:[#allocation2 + $0x24] sm:$0xf]
        %v194 = vld [vmem:[#allocation2 + $0x28] sm:$0xf]
        %v195 = vld [vmem:[#allocation2 + $0x2c] sm:$0xf]
        %v196 = vld [vmem:[#allocation2 + $0x30] sm:$0xf]
        %v197 = vld [vmem:[#allocation2 + $0x34] sm:$0xf]
        %v198 = vld [vmem:[#allocation2 + $0x38] sm:$0xf]
        %v199 = vld [vmem:[#allocation2 + $0x3c] sm:$0xf]
        %v200 = vld [vmem:[%s2] sm:$0x1]
        %v202 = vlaneseq
        %v203 = vshrl.u32 %v202, 7
        %v204 = vsub.s32 0, %v203
        %v205 = vrot.slane %v200, %v204
        %v223 = vunpack.c.l.b16 %v184
        %v224 = vunpack.c.l.b16 %v185
        %v225 = vunpack.c.l.b16 %v186
        %v226 = vunpack.c.l.b16 %v187
        %v227 = vunpack.c.l.b16 %v188
        %v228 = vunpack.c.l.b16 %v189
        %v229 = vunpack.c.l.b16 %v190
        %v230 = vunpack.c.l.b16 %v191
        %v231 = vunpack.c.l.b16 %v192
        %v232 = vunpack.c.l.b16 %v193
        %v233 = vunpack.c.l.b16 %v194
        %v234 = vunpack.c.l.b16 %v195
        %v235 = vunpack.c.l.b16 %v196
        %v236 = vunpack.c.l.b16 %v197
        %v237 = vunpack.c.l.b16 %v198
        %v238 = vunpack.c.l.b16 %v199
        %v239 = vpack.c.b16 %v224, %v223
        %v240 = vpack.c.b16 %v226, %v225
        %v241 = vpack.c.b16 %v228, %v227
        %v242 = vpack.c.b16 %v230, %v229
        %v243 = vpack.c.b16 %v232, %v231
        %v244 = vpack.c.b16 %v234, %v233
        %v245 = vpack.c.b16 %v236, %v235
        %v246 = vpack.c.b16 %v238, %v237
        %255 = vmatprep.subr.bf16.mxu0 0
        %256 = vmatpush1.bf16.msra.mxu0 %v246
        %257 = vmatprep.subr.bf16.mxu0 0
        %258 = vmatpush1.bf16.msra.mxu0 %v245
        %259 = vmatprep.subr.bf16.mxu0 0
        %260 = vmatpush1.bf16.msra.mxu0 %v244
        %261 = vmatprep.subr.bf16.mxu0 0
        %262 = vmatpush1.bf16.msra.mxu0 %v243
        %263 = vmatprep.subr.bf16.mxu0 0
        %264 = vmatpush1.bf16.msra.mxu0 %v242
        %265 = vmatprep.subr.bf16.mxu0 0
        %266 = vmatpush1.bf16.msra.mxu0 %v241
        %267 = vmatprep.subr.bf16.mxu0 0
        %268 = vmatpush1.bf16.msra.mxu0 %v240
        %269 = vmatprep.subr.bf16.mxu0 0
        %270 = vmatpush1.bf16.msra.mxu0 %v239
        %271 = vmatprep.subr.bf16.mxu0 0
        %272 = vmatpush2.bf16.msra.mxu0 0
        %273 = vmatprep.subr.bf16.mxu0 0
        %274 = vmatpush2.bf16.msra.mxu0 0
        %275 = vmatprep.subr.bf16.mxu0 0
        %276 = vmatpush2.bf16.msra.mxu0 0
        %277 = vmatprep.subr.bf16.mxu0 0
        %278 = vmatpush2.bf16.msra.mxu0 0
        %279 = vmatprep.subr.bf16.mxu0 0
        %280 = vmatpush2.bf16.msra.mxu0 0
        %281 = vmatprep.subr.bf16.mxu0 0
        %282 = vmatpush2.bf16.msra.mxu0 0
        %283 = vmatprep.subr.bf16.mxu0 0
        %284 = vmatpush2.bf16.msra.mxu0 0
        %285 = vmatprep.subr.bf16.mxu0 0
        %286 = vmatpush2.bf16.msra.mxu0 0
        %287 = vmatprep.mubr.bf16.mxu0 0
        %288 = vmatmul.mubr.bf16.gmra.mxu0 %v183
        %v289 = vpop.f32.mrf.mxu0
        %v290 = vadd.f32 %v205, %v289
        %v291 = vpop.f32.mrf.mxu0
        %v292 = vpop.f32.mrf.mxu0
        %v293 = vpop.f32.mrf.mxu0
        %294 = vdwg.mxu0
        %v295 = vadd.f32 %v290, %v182
        %296 = vst [vmem:[%s180] sm:$0xff] %v295
        %p297 = scmp.lt.s32.totalorder %s15, 1
        %s298 = scalar_select %p297, %s15, 1
        %s299 = smul.addr %s298, 8
        %s300 = scalar_lea.vmem %s3, %s299
        // Predicated region
        $region37: #{residual_adding.1} parent=31 // pred_check
          %p301 = pneg %p101
        $region38: #{residual_adding.1} parent=31 // pred_check_branch
          %303 = sbr.rel (%p301) target = $region40
        $region39: #{residual_adding.1} parent=31 // pred_region
          _
        $region40: #{residual_adding.1} parent=31 // pred_fallthru
          _
      $region32: #{residual_adding.1} parent=5 // pred_fallthru
        _
      %p304 = scmp.le.s32.totalorder 2, %s10
      // Predicated region
      $region41: #{residual_adding.1} parent=5 // pred_check
        %p305 = pneg %p304
      $region42: #{residual_adding.1} parent=5 // pred_check_branch
        %307 = sbr.rel (%p305) target = $region44
      $region43: #{residual_adding.1} parent=5 // pred_region
        %s308 = ssub.s32 %s10, 2
        // Predicated region
        $region45: #{residual_adding.1} parent=43 // pred_check
          %p309 = pneg %p107
        $region46: #{residual_adding.1} parent=43 // pred_check_branch
          %311 = sbr.rel (%p309) target = $region48
        $region47: #{residual_adding.1} parent=43 // pred_region
          %p312 = scmp.lt.s32.totalorder %s16, 1
          %s313 = scalar_select %p312, %s16, 1
          %s314 = smul.addr %s313, 8
          %s315 = scalar_lea.vmem %s3, %s314
        $region48: #{residual_adding.1} parent=43 // pred_fallthru
          _
      $region44: #{residual_adding.1} parent=5 // pred_fallthru
        _
    $region6: #{residual_adding.1} parent=1 // loop_footer
      %s14 = sadd.s32 1, %s10
    $region7: #{residual_adding.1} parent=1 // loop_footer_branch
      %9 = sbr.rel target = $region3
    $region8: #{residual_adding.1} parent=1 // loop_exit
      _
    %316 = vsyncpa [#allocation3], 1
    %s317 = scalar_lea.sflag [#allocation3], 1
    %318 = vsyncpa %s317, 1

</llo_original>
